<compile_context>
chip_gen: v7x
topology: tpu7x:2x2x1
jax: 0.10.0
libtpu: 0.0.40
codegen_flags: <defaults>
</compile_context>

<pallas_src>
import jax
import jax.numpy as jnp
from jax.experimental import pallas as pl
from jax.experimental.pallas import tpu as pltpu

_MIB = 1024 * 1024


def _copy_kernel(x_ref, o_ref):
    # Identity copy of the current tile (pure streaming copy: 1 vld + 1 vst).
    o_ref[...] = x_ref[...]


def _tpu_vmem_capacity_bytes() -> int:
    try:
        return int(pltpu.get_tpu_info().vmem_capacity_bytes)
    except Exception:  # pragma: no cover - conservative default (v7x-sized VMEM)
        return 64 * _MIB


def _copy_params() -> tuple[int, int]:
    """(target_tile_bytes, vmem_limit_bytes) per TPU generation."""
    vmem = _tpu_vmem_capacity_bytes()
    if vmem >= 96 * _MIB:
        # v5e / v6e: 128 MiB physical VMEM; default scoped limit is only 16/32 MiB.
        return 4 * _MIB, 64 * _MIB
    # v7x-class: 64 MiB physical VMEM per TensorCore, ~3.2 TB/s HBM.
    # 2 in + 2 out buffers @ 8 MiB = 32 MiB, comfortably under the 44 MiB limit.
    return 8 * _MIB, 44 * _MIB


def _pick_block_rows(rows: int, lanes: int, itemsize: int, target_tile_bytes: int) -> int:
    # Packed sublane tile: 8 for 4-byte dtypes, 16 for 2-byte, 32 for 1-byte.
    sub = max(8, 32 // itemsize)
    total_bytes = rows * lanes * itemsize

    max_block_rows = max(sub, (target_tile_bytes // (lanes * itemsize) // sub) * sub)

    if total_bytes > 2 * _MIB:
        # Enforce grid >= 4 so both v7x TensorCores stream and the
        # double-buffered pipeline always has a tile in flight.
        cap = max(sub, (pl.cdiv(rows, 4) // sub) * sub)
        return min(max_block_rows, cap)

    # Small tensor: one full-extent block (layout-safe) or a sub-multiple block.
    return rows if rows <= max_block_rows else max_block_rows


def _pallas_copy_2d(x2d: jax.Array, block_rows: int, vmem_limit_bytes: int,
                    donate: bool) -> jax.Array:
    rows, lanes = x2d.shape
    grid = (pl.cdiv(rows, block_rows),)
    return pl.pallas_call(
        _copy_kernel,
        out_shape=jax.ShapeDtypeStruct((rows, lanes), x2d.dtype),
        grid_spec=pltpu.PrefetchScalarGridSpec(
            num_scalar_prefetch=0,
            grid=grid,
            in_specs=[pl.BlockSpec((block_rows, lanes), lambda i: (i, 0))],
            out_specs=pl.BlockSpec((block_rows, lanes), lambda i: (i, 0)),
        ),
        compiler_params=pltpu.CompilerParams(
            dimension_semantics=("parallel",),
            vmem_limit_bytes=vmem_limit_bytes,
        ),
        input_output_aliases=({0: 0} if donate else {}),
    )(x2d)


def flatten_pallas(x: jax.Array, *, materialize: bool = False,
                   donate: bool = False) -> jax.Array:
    """Equivalent of torch `x.view(x.size(0), -1)` for any ND input.

    materialize=False (default): metadata-only reshape — zero HBM traffic.
    materialize=True: explicit streaming copy through a Pallas kernel.
    donate=True: alias the copy's output onto its input buffer (halves peak
    HBM footprint; caller should donate x).
    """
    B = x.shape[0]
    D = 1
    for s in x.shape[1:]:
        D *= s

    if not materialize:
        # Flatten is a row-major metadata reshape; no data movement at all.
        return jnp.reshape(x, (B, D))

    N = B * D
    itemsize = jnp.dtype(x.dtype).itemsize

    # Pick a lane width L (multiple of 128) dividing N, preferring >= 8 rows so
    # tiles fill whole (8, 128) vregs.
    L = None
    for cand in (2048, 1024, 512, 256, 128):
        if N % cand == 0 and (N // cand) >= 8:
            L = cand
            break
    if L is None:
        for cand in (2048, 1024, 512, 256, 128):
            if N % cand == 0:
                L = cand
                break

    if L is None:
        # N not a multiple of 128: such shapes are tiny, and a narrow (B, D)
        # Pallas slab would only produce masked partial stores.  In JAX a
        # reshape is semantically identical to a materialized copy (arrays are
        # immutable), so return it directly.
        return jnp.reshape(x, (B, D))

    rows = N // L
    target_tile_bytes, vmem_limit_bytes = _copy_params()
    block_rows = _pick_block_rows(rows, L, itemsize, target_tile_bytes)

    flat = jnp.reshape(x, (rows, L))                 # metadata-only re-slab
    out = _pallas_copy_2d(flat, block_rows, vmem_limit_bytes, donate)
    return jnp.reshape(out, (B, D))                  # metadata-only


if __name__ == "__main__":
    key = jax.random.PRNGKey(0)

    # Small NCHW input consistent with a conv feature map: B=2, C=4, H=W=16.
    x = jax.random.normal(key, (2, 4, 16, 16), dtype=jnp.float32)
    y_ref = jnp.reshape(x, (x.shape[0], -1))

    # Preferred production path: metadata-only (zero HBM traffic).
    y_view = jax.block_until_ready(flatten_pallas(x))
    assert y_view.shape == (2, 4 * 16 * 16) and y_view.dtype == x.dtype
    assert bool(jnp.array_equal(y_view, y_ref))

    # Materialized Pallas copy path (small tensor → single full-extent tile).
    y_mat = jax.block_until_ready(flatten_pallas(x, materialize=True))
    assert y_mat.shape == y_ref.shape and y_mat.dtype == x.dtype
    assert bool(jnp.array_equal(y_mat, y_ref))

    # Medium tensor exercising the multi-tile / min-grid-length path (4 MiB).
    x_big = jax.random.normal(key, (4, 64, 64, 64), dtype=jnp.float32)
    y_big = jax.block_until_ready(flatten_pallas(x_big, materialize=True))
    assert bool(jnp.array_equal(y_big, jnp.reshape(x_big, (4, -1))))

    # bf16 input exercising the packed-sublane block rounding.
    x_bf = jax.random.normal(key, (2, 8, 32, 32), dtype=jnp.bfloat16)
    y_bf = jax.block_until_ready(flatten_pallas(x_bf, materialize=True))
    assert bool(jnp.array_equal(y_bf, jnp.reshape(x_bf, (2, -1))))

    # Odd-shaped input (N not a multiple of 128) → metadata-only fallback.
    x_odd = jax.random.normal(key, (2, 3, 5, 7), dtype=jnp.float32)
    y_odd = jax.block_until_ready(flatten_pallas(x_odd, materialize=True))
    assert bool(jnp.array_equal(y_odd, jnp.reshape(x_odd, (2, -1))))

    print("KERNEL_OK")
</pallas_src>

<mosaic_0001>
module attributes {stable_mosaic.version = 11 : i64} {
  func.func @_copy_kernel(%arg0: i32, %arg1: memref<8x256xf32, #tpu.memory_space<vmem>>, %arg2: memref<8x256xf32, #tpu.memory_space<vmem>>) attributes {dimension_semantics = [#tpu.dimension_semantics<parallel>], iteration_bounds = array<i64: 1>, scalar_prefetch = 0 : i64, scratch_operands = 0 : i64, tpu.core_type = #tpu.core_type<tc>, window_params = [{transform_indices = @transform_0, window_bounds = array<i64: 8, 256>}, {transform_indices = @transform_1, window_bounds = array<i64: 8, 256>}]} {
    %c0 = arith.constant 0 : index
    %c0_0 = arith.constant 0 : index
    %0 = vector.load %arg1[%c0, %c0_0] : memref<8x256xf32, #tpu.memory_space<vmem>>, vector<8x256xf32>
    %c0_1 = arith.constant 0 : index
    %c0_2 = arith.constant 0 : index
    %1 = vector.load %arg2[%c0_1, %c0_2] : memref<8x256xf32, #tpu.memory_space<vmem>>, vector<8x256xf32>
    tpu.vector_store %arg2[%c0_1, %c0_2], %0 {strides = array<i32>} : memref<8x256xf32, #tpu.memory_space<vmem>>, vector<8x256xf32>,
    return
  }
  func.func @transform_0(%arg0: i32) -> (i32, i32) {
    %c0_i32 = arith.constant 0 : i32
    %c0_i32_0 = arith.constant 0 : i32
    return %arg0, %c0_i32 : i32, i32
  }
  func.func @transform_1(%arg0: i32) -> (i32, i32) {
    %c0_i32 = arith.constant 0 : i32
    %c0_i32_0 = arith.constant 0 : i32
    return %arg0, %c0_i32 : i32, i32
  }
}

</mosaic_0001>

<llo_original>
// kernel: tpu_custom_call.1
$region0: #{tpu_custom_call.1}
  #allocation0 [shape = 'u32[]', space=smem, size = 0x4, offset = 0x4, fixed_abs, tag = 'smem constant byte address 0x4 - core index']
  #allocation1 [shape = 'u32[144,128]{1,0:T(1,128)}', space=vmem, size = 0x12000, scoped, tag = 'internal scratch']
  %s0 = inlined_call_operand.hbm [shape: f32[8,256], index: 0, kind: input, shape index: {}]
  %s1 = inlined_call_operand.hbm [shape: f32[8,256], index: 1, kind: output, shape index: {}]
  %s2 = sld [smem:[#allocation0]]
  $region18: #{tpu_custom_call.1} parent=0
    _
  %s4 = ssub.s32 1, %s2
  %s5 = scalar_select 0, %s4, %s2
  $region1: #{tpu_custom_call.1} parent=0
    #allocation2 [shape = 'u8[8192]{0}', space=vmem, size = 0x2000, scoped, tag = 'input window, operand 0, single buffered']
    #allocation3 [shape = 's32[1]{0}', space=sflag, size = 0x4, scoped, tag = 'scoped memory for tpu_custom_call.1']
    #allocation4 [shape = 's32[1]{0}', space=sflag, size = 0x4, scoped, tag = 'scoped memory for tpu_custom_call.1']
    #allocation5 [shape = 'u8[8192]{0}', space=vmem, size = 0x2000, scoped, tag = 'output window, operand 0, single buffered']
    %6 = vsyncpa [#allocation3], 0
    %7 = vsyncpa [#allocation4], 0
    // Predicated region
    $region2: #{tpu_custom_call.1} parent=1 // pred_check
      _
    $region3: #{tpu_custom_call.1} parent=1 // pred_check_branch
      %9 = sbr.rel (0) target = $region5
    $region4: #{tpu_custom_call.1} parent=1 // pred_region
      %s11 = ssub.s32 256, 256
      %12 = vsyncadd [#allocation3], %s11
      %s14 = sshll.u32 [#allocation2], 4
      %s15 = int_to_ptr.vmem [resolvable:$true] %s14
      %17 = dma.hbm_to_vmem [thread:$0]  %s0, 256, %s15, [#allocation3]
    $region5: #{tpu_custom_call.1} parent=1 // pred_fallthru
      _
    // Predicated region
    $region6: #{tpu_custom_call.1} parent=1 // pred_check
      _
    $region7: #{tpu_custom_call.1} parent=1 // pred_check_branch
      %19 = sbr.rel (0) target = $region9
    $region8: #{tpu_custom_call.1} parent=1 // pred_region
      %20 = dma.done [#allocation3], 256
    $region9: #{tpu_custom_call.1} parent=1 // pred_fallthru
      _
    %v21 = vld [vmem:[#allocation2] sm:$0xff]
    %v22 = vld [vmem:[#allocation2 + $0x8] sm:$0xff]
    %23 = vst [vmem:[#allocation5] sm:$0xff] %v21
    %24 = vst [vmem:[#allocation5 + $0x8] sm:$0xff] %v22
    // Predicated region
    $region10: #{tpu_custom_call.1} parent=1 // pred_check
      _
    $region11: #{tpu_custom_call.1} parent=1 // pred_check_branch
      %26 = sbr.rel (0) target = $region13
    $region12: #{tpu_custom_call.1} parent=1 // pred_region
      %s28 = ssub.s32 256, 256
      %29 = vsyncadd [#allocation4], %s28
      %s31 = sshll.u32 [#allocation5], 4
      %s32 = int_to_ptr.vmem [resolvable:$true] %s31
      %34 = dma.vmem_to_hbm [thread:$0]  %s32, 256, %s1, [#allocation4]
    $region13: #{tpu_custom_call.1} parent=1 // pred_fallthru
      _
    // Predicated region
    $region14: #{tpu_custom_call.1} parent=1 // pred_check
      _
    $region15: #{tpu_custom_call.1} parent=1 // pred_check_branch
      %36 = sbr.rel (0) target = $region17
    $region16: #{tpu_custom_call.1} parent=1 // pred_region
      %37 = dma.done [#allocation4], 256
    $region17: #{tpu_custom_call.1} parent=1 // pred_fallthru
      _
    %38 = vsyncpa [#allocation3], 1
    %39 = vsyncpa [#allocation4], 1

</llo_original>
